<compile_context>
chip_gen: v7x
topology: tpu7x:2x2x1
jax: 0.10.0
libtpu: 0.0.40
codegen_flags: <defaults>
</compile_context>

<pallas_src>
import jax
import jax.numpy as jnp
from jax.experimental import pallas as pl
from jax.experimental.pallas import tpu as pltpu


def policy_kernel(x_ref,
                  w1_ref, b1_ref,
                  w2_ref, b2_ref,
                  w3_ref, b3_ref,
                  wh_ref, bh_ref,
                  out_ref):
    # dense1 + relu (dropout p=0.0 -> identity). x is already bf16.
    h = jnp.dot(x_ref[...], w1_ref[...],
                preferred_element_type=jnp.float32) + b1_ref[...]
    h = jnp.maximum(h, 0.0).astype(jnp.bfloat16)

    # dense2 + relu (dominant matmul: [BM,256] x [256,256])
    h = jnp.dot(h, w2_ref[...],
                preferred_element_type=jnp.float32) + b2_ref[...]
    h = jnp.maximum(h, 0.0).astype(jnp.bfloat16)

    # dense3 + relu
    h = jnp.dot(h, w3_ref[...],
                preferred_element_type=jnp.float32) + b3_ref[...]
    h = jnp.maximum(h, 0.0).astype(jnp.bfloat16)

    # fused heads: one [64, n_actions+n_goal+n_modes] matmul, one output write
    out = jnp.dot(h, wh_ref[...],
                  preferred_element_type=jnp.float32) + bh_ref[...]
    out_ref[...] = out.astype(out_ref.dtype)


def policy_forward(state, params, *, block_batch=1024):
    """state: [B, n_state] float32. params: dict of f32 weights/biases.

    Returns (action [B, n_actions], goal [B, n_goal], mode [B, n_modes]) in f32.
    """
    B, n_state = state.shape
    n_actions = params["wa"].shape[1]
    n_goal = params["wg"].shape[1]
    n_modes = params["wm"].shape[1]
    n_head = n_actions + n_goal + n_modes

    # ---- wrapper-side packing -------------------------------------------
    # Zero-pad the contraction dim of layer 1 (10 -> 16) and cast input to
    # bf16 here (halves input DMA bytes vs streaming f32).
    kp = 16 * pl.cdiv(n_state, 16)
    x = jnp.pad(state, ((0, 0), (0, kp - n_state))).astype(jnp.bfloat16)
    w1 = jnp.pad(params["w1"], ((0, kp - n_state), (0, 0))).astype(jnp.bfloat16)
    w2 = params["w2"].astype(jnp.bfloat16)
    w3 = params["w3"].astype(jnp.bfloat16)
    # Fuse the three heads into a single weight/bias.
    wh = jnp.concatenate([params["wa"], params["wg"], params["wm"]],
                         axis=1).astype(jnp.bfloat16)
    bh = jnp.concatenate([params["ba"], params["bg"], params["bm"]], axis=1)
    b1, b2, b3 = params["b1"], params["b2"], params["b3"]

    # Batch tiling: balanced tiles, multiples of 16 (bf16 sublane packing).
    # Force >=2 grid steps when there is enough work, so the parallel batch
    # axis shards across v7x's two TensorCores.
    n_tiles = pl.cdiv(B, block_batch)
    if B >= 32:
        n_tiles = max(n_tiles, 2)
    BM = 16 * pl.cdiv(B, 16 * n_tiles)
    Bp = BM * n_tiles
    if Bp != B:
        x = jnp.pad(x, ((0, Bp - B), (0, 0)))
    grid = (n_tiles,)

    weight_args = (w1, b1, w2, b2, w3, b3, wh, bh)
    # Weight / bias blocks: full arrays, same block every grid step
    # (stay VMEM-resident across the batch loop).
    weight_specs = [pl.BlockSpec(a.shape, lambda i: (0, 0)) for a in weight_args]

    h1, h2, h3 = 256, 256, 64
    flops = 2 * Bp * (kp * h1 + h1 * h2 + h2 * h3 + h3 * n_head)
    bytes_accessed = (
        2 * (kp * h1 + h1 * h2 + h2 * h3 + h3 * n_head)      # bf16 weights
        + 4 * (h1 + h2 + h3 + n_head)                         # f32 biases
        + 2 * Bp * kp                                         # bf16 input
        + 2 * Bp * n_head                                     # bf16 output
    )

    out = pl.pallas_call(
        policy_kernel,
        out_shape=jax.ShapeDtypeStruct((Bp, n_head), jnp.bfloat16),
        grid=grid,
        in_specs=[pl.BlockSpec((BM, kp), lambda i: (i, 0))] + weight_specs,
        out_specs=pl.BlockSpec((BM, n_head), lambda i: (i, 0)),
        compiler_params=pltpu.CompilerParams(
            dimension_semantics=("parallel",)),
        cost_estimate=pl.CostEstimate(flops=flops,
                                      transcendentals=0,
                                      bytes_accessed=bytes_accessed),
    )(x, *weight_args)

    out = out[:B].astype(jnp.float32)
    action = out[:, :n_actions]
    goal = out[:, n_actions:n_actions + n_goal]
    mode = out[:, n_actions + n_goal:]
    return action, goal, mode


def init_params(key, n_state=10, n_actions=8, n_goal=2, n_modes=2):
    """Deterministic init mimicking torch.nn.Linear (U(-1/sqrt(fan_in), +))."""
    def linear(key, fan_in, fan_out):
        kw, kb = jax.random.split(key)
        bound = 1.0 / jnp.sqrt(float(fan_in))
        w = jax.random.uniform(kw, (fan_in, fan_out), jnp.float32, -bound, bound)
        b = jax.random.uniform(kb, (1, fan_out), jnp.float32, -bound, bound)
        return w, b

    keys = jax.random.split(key, 6)
    w1, b1 = linear(keys[0], n_state, 256)
    w2, b2 = linear(keys[1], 256, 256)
    w3, b3 = linear(keys[2], 256, 64)
    wa, ba = linear(keys[3], 64, n_actions)
    wg, bg = linear(keys[4], 64, n_goal)
    wm, bm = linear(keys[5], 64, n_modes)
    return dict(w1=w1, b1=b1, w2=w2, b2=b2, w3=w3, b3=b3,
                wa=wa, ba=ba, wg=wg, bg=bg, wm=wm, bm=bm)


def policy_reference(state, p):
    """Pure-f32 JAX reference (matches the PyTorch module math)."""
    h = jax.nn.relu(state @ p["w1"] + p["b1"])
    h = jax.nn.relu(h @ p["w2"] + p["b2"])
    h = jax.nn.relu(h @ p["w3"] + p["b3"])
    return (h @ p["wa"] + p["ba"], h @ p["wg"] + p["bg"], h @ p["wm"] + p["bm"])


if __name__ == "__main__":
    key = jax.random.PRNGKey(0)
    k_params, k_state = jax.random.split(key)

    B, n_state = 8, 10
    params = init_params(k_params, n_state=n_state)
    state = jax.random.normal(k_state, (B, n_state), jnp.float32)

    action, goal, mode = jax.block_until_ready(policy_forward(state, params))

    # sanity check against pure-JAX f32 reference (kernel uses bf16 weights /
    # activations / output, so compare with a bf16-appropriate tolerance).
    ref_a, ref_g, ref_m = policy_reference(state, params)
    assert action.shape == (B, 8) and goal.shape == (B, 2) and mode.shape == (B, 2)
    assert jnp.allclose(action, ref_a, atol=4e-2, rtol=4e-2)
    assert jnp.allclose(goal, ref_g, atol=4e-2, rtol=4e-2)
    assert jnp.allclose(mode, ref_m, atol=4e-2, rtol=4e-2)

    print("KERNEL_OK")
</pallas_src>

<mosaic_0001>
module attributes {stable_mosaic.version = 11 : i64} {
  func.func @policy_kernel(%arg0: i32, %arg1: memref<16x16xbf16, #tpu.memory_space<vmem>>, %arg2: memref<16x256xbf16, #tpu.memory_space<vmem>>, %arg3: memref<1x256xf32, #tpu.memory_space<vmem>>, %arg4: memref<256x256xbf16, #tpu.memory_space<vmem>>, %arg5: memref<1x256xf32, #tpu.memory_space<vmem>>, %arg6: memref<256x64xbf16, #tpu.memory_space<vmem>>, %arg7: memref<1x64xf32, #tpu.memory_space<vmem>>, %arg8: memref<64x12xbf16, #tpu.memory_space<vmem>>, %arg9: memref<1x12xf32, #tpu.memory_space<vmem>>, %arg10: memref<16x12xbf16, #tpu.memory_space<vmem>>) attributes {dimension_semantics = [#tpu.dimension_semantics<parallel>], iteration_bounds = array<i64: 1>, scalar_prefetch = 0 : i64, scratch_operands = 0 : i64, tpu.core_type = #tpu.core_type<tc>, window_params = [{transform_indices = @transform_0, window_bounds = array<i64: 16, 16>}, {pipeline_mode = #tpu.pipeline_mode<synchronous>, transform_indices = @transform_1, window_bounds = array<i64: 16, 256>}, {pipeline_mode = #tpu.pipeline_mode<synchronous>, transform_indices = @transform_2, window_bounds = array<i64: 1, 256>}, {pipeline_mode = #tpu.pipeline_mode<synchronous>, transform_indices = @transform_3, window_bounds = array<i64: 256, 256>}, {pipeline_mode = #tpu.pipeline_mode<synchronous>, transform_indices = @transform_4, window_bounds = array<i64: 1, 256>}, {pipeline_mode = #tpu.pipeline_mode<synchronous>, transform_indices = @transform_5, window_bounds = array<i64: 256, 64>}, {pipeline_mode = #tpu.pipeline_mode<synchronous>, transform_indices = @transform_6, window_bounds = array<i64: 1, 64>}, {pipeline_mode = #tpu.pipeline_mode<synchronous>, transform_indices = @transform_7, window_bounds = array<i64: 64, 12>}, {pipeline_mode = #tpu.pipeline_mode<synchronous>, transform_indices = @transform_8, window_bounds = array<i64: 1, 12>}, {transform_indices = @transform_9, window_bounds = array<i64: 16, 12>}]} {
    %c0 = arith.constant 0 : index
    %c0_0 = arith.constant 0 : index
    %0 = vector.load %arg1[%c0, %c0_0] : memref<16x16xbf16, #tpu.memory_space<vmem>>, vector<16x16xbf16>
    %c0_1 = arith.constant 0 : index
    %c0_2 = arith.constant 0 : index
    %1 = vector.load %arg2[%c0_1, %c0_2] : memref<16x256xbf16, #tpu.memory_space<vmem>>, vector<16x256xbf16>
    %cst = arith.constant dense<0.000000e+00> : vector<16x256xf32>
    %2 = tpu.matmul %0, %1, %cst {dimension_numbers = #tpu.dot_dimension_numbers<[1], [0], [0], [1], [0, 0, 1, 1], [], []>} : vector<16x16xbf16>, vector<16x256xbf16>, vector<16x256xf32> -> vector<16x256xf32>
    %c0_3 = arith.constant 0 : index
    %c0_4 = arith.constant 0 : index
    %3 = vector.load %arg3[%c0_3, %c0_4] : memref<1x256xf32, #tpu.memory_space<vmem>>, vector<1x256xf32>
    %4 = vector.broadcast %3 : vector<1x256xf32> to vector<16x256xf32>
    %5 = arith.addf %2, %4 : vector<16x256xf32>
    %cst_5 = arith.constant 0.000000e+00 : f32
    %6 = vector.broadcast %cst_5 : f32 to vector<16x256xf32>
    %7 = arith.maximumf %5, %6 : vector<16x256xf32>
    %8 = arith.truncf %7 : vector<16x256xf32> to vector<16x256xbf16>
    %c0_6 = arith.constant 0 : index
    %c0_7 = arith.constant 0 : index
    %9 = vector.load %arg4[%c0_6, %c0_7] : memref<256x256xbf16, #tpu.memory_space<vmem>>, vector<256x256xbf16>
    %cst_8 = arith.constant dense<0.000000e+00> : vector<16x256xf32>
    %10 = tpu.matmul %8, %9, %cst_8 {dimension_numbers = #tpu.dot_dimension_numbers<[1], [0], [0], [1], [0, 0, 1, 1], [], []>} : vector<16x256xbf16>, vector<256x256xbf16>, vector<16x256xf32> -> vector<16x256xf32>
    %c0_9 = arith.constant 0 : index
    %c0_10 = arith.constant 0 : index
    %11 = vector.load %arg5[%c0_9, %c0_10] : memref<1x256xf32, #tpu.memory_space<vmem>>, vector<1x256xf32>
    %12 = vector.broadcast %11 : vector<1x256xf32> to vector<16x256xf32>
    %13 = arith.addf %10, %12 : vector<16x256xf32>
    %cst_11 = arith.constant 0.000000e+00 : f32
    %14 = vector.broadcast %cst_11 : f32 to vector<16x256xf32>
    %15 = arith.maximumf %13, %14 : vector<16x256xf32>
    %16 = arith.truncf %15 : vector<16x256xf32> to vector<16x256xbf16>
    %c0_12 = arith.constant 0 : index
    %c0_13 = arith.constant 0 : index
    %17 = vector.load %arg6[%c0_12, %c0_13] : memref<256x64xbf16, #tpu.memory_space<vmem>>, vector<256x64xbf16>
    %cst_14 = arith.constant dense<0.000000e+00> : vector<16x64xf32>
    %18 = tpu.matmul %16, %17, %cst_14 {dimension_numbers = #tpu.dot_dimension_numbers<[1], [0], [0], [1], [0, 0, 1, 1], [], []>} : vector<16x256xbf16>, vector<256x64xbf16>, vector<16x64xf32> -> vector<16x64xf32>
    %c0_15 = arith.constant 0 : index
    %c0_16 = arith.constant 0 : index
    %19 = vector.load %arg7[%c0_15, %c0_16] : memref<1x64xf32, #tpu.memory_space<vmem>>, vector<1x64xf32>
    %20 = vector.broadcast %19 : vector<1x64xf32> to vector<16x64xf32>
    %21 = arith.addf %18, %20 : vector<16x64xf32>
    %cst_17 = arith.constant 0.000000e+00 : f32
    %22 = vector.broadcast %cst_17 : f32 to vector<16x64xf32>
    %23 = arith.maximumf %21, %22 : vector<16x64xf32>
    %24 = arith.truncf %23 : vector<16x64xf32> to vector<16x64xbf16>
    %c0_18 = arith.constant 0 : index
    %c0_19 = arith.constant 0 : index
    %25 = vector.load %arg8[%c0_18, %c0_19] : memref<64x12xbf16, #tpu.memory_space<vmem>>, vector<64x12xbf16>
    %cst_20 = arith.constant dense<0.000000e+00> : vector<16x12xf32>
    %26 = tpu.matmul %24, %25, %cst_20 {dimension_numbers = #tpu.dot_dimension_numbers<[1], [0], [0], [1], [0, 0, 1, 1], [], []>} : vector<16x64xbf16>, vector<64x12xbf16>, vector<16x12xf32> -> vector<16x12xf32>
    %c0_21 = arith.constant 0 : index
    %c0_22 = arith.constant 0 : index
    %27 = vector.load %arg9[%c0_21, %c0_22] : memref<1x12xf32, #tpu.memory_space<vmem>>, vector<1x12xf32>
    %28 = vector.broadcast %27 : vector<1x12xf32> to vector<16x12xf32>
    %29 = arith.addf %26, %28 : vector<16x12xf32>
    %30 = arith.truncf %29 : vector<16x12xf32> to vector<16x12xbf16>
    %c0_23 = arith.constant 0 : index
    %c0_24 = arith.constant 0 : index
    %31 = vector.load %arg10[%c0_23, %c0_24] : memref<16x12xbf16, #tpu.memory_space<vmem>>, vector<16x12xbf16>
    tpu.vector_store %arg10[%c0_23, %c0_24], %30 {strides = array<i32>} : memref<16x12xbf16, #tpu.memory_space<vmem>>, vector<16x12xbf16>,
    return
  }
  func.func @transform_0(%arg0: i32) -> (i32, i32) {
    %c0_i32 = arith.constant 0 : i32
    %c0_i32_0 = arith.constant 0 : i32
    return %arg0, %c0_i32 : i32, i32
  }
  func.func @transform_1(%arg0: i32) -> (i32, i32) {
    %c0_i32 = arith.constant 0 : i32
    %c0_i32_0 = arith.constant 0 : i32
    %c0_i32_1 = arith.constant 0 : i32
    return %c0_i32, %c0_i32_0 : i32, i32
  }
  func.func @transform_2(%arg0: i32) -> (i32, i32) {
    %c0_i32 = arith.constant 0 : i32
    %c0_i32_0 = arith.constant 0 : i32
    %c0_i32_1 = arith.constant 0 : i32
    return %c0_i32, %c0_i32_0 : i32, i32
  }
  func.func @transform_3(%arg0: i32) -> (i32, i32) {
    %c0_i32 = arith.constant 0 : i32
    %c0_i32_0 = arith.constant 0 : i32
    %c0_i32_1 = arith.constant 0 : i32
    return %c0_i32, %c0_i32_0 : i32, i32
  }
  func.func @transform_4(%arg0: i32) -> (i32, i32) {
    %c0_i32 = arith.constant 0 : i32
    %c0_i32_0 = arith.constant 0 : i32
    %c0_i32_1 = arith.constant 0 : i32
    return %c0_i32, %c0_i32_0 : i32, i32
  }
  func.func @transform_5(%arg0: i32) -> (i32, i32) {
    %c0_i32 = arith.constant 0 : i32
    %c0_i32_0 = arith.constant 0 : i32
    %c0_i32_1 = arith.constant 0 : i32
    return %c0_i32, %c0_i32_0 : i32, i32
  }
  func.func @transform_6(%arg0: i32) -> (i32, i32) {
    %c0_i32 = arith.constant 0 : i32
    %c0_i32_0 = arith.constant 0 : i32
    %c0_i32_1 = arith.constant 0 : i32
    return %c0_i32, %c0_i32_0 : i32, i32
  }
  func.func @transform_7(%arg0: i32) -> (i32, i32) {
    %c0_i32 = arith.constant 0 : i32
    %c0_i32_0 = arith.constant 0 : i32
    %c0_i32_1 = arith.constant 0 : i32
    return %c0_i32, %c0_i32_0 : i32, i32
  }
  func.func @transform_8(%arg0: i32) -> (i32, i32) {
    %c0_i32 = arith.constant 0 : i32
    %c0_i32_0 = arith.constant 0 : i32
    %c0_i32_1 = arith.constant 0 : i32
    return %c0_i32, %c0_i32_0 : i32, i32
  }
  func.func @transform_9(%arg0: i32) -> (i32, i32) {
    %c0_i32 = arith.constant 0 : i32
    %c0_i32_0 = arith.constant 0 : i32
    return %arg0, %c0_i32 : i32, i32
  }
}

</mosaic_0001>

<llo_original>
// kernel: tpu_custom_call.1
$region0: #{tpu_custom_call.1}
  #allocation0 [shape = 'u32[]', space=smem, size = 0x4, offset = 0x4, fixed_abs, tag = 'smem constant byte address 0x4 - core index']
  #allocation1 [shape = 'u32[144,128]{1,0:T(1,128)}', space=vmem, size = 0x12000, scoped, tag = 'internal scratch']
  %s0 = inlined_call_operand.vmem [shape: bf16[16,16], index: 0, kind: input, shape index: {}]
  %s1 = inlined_call_operand.vmem [shape: bf16[16,256], index: 1, kind: input, shape index: {}]
  %s2 = inlined_call_operand.vmem [shape: f32[1,256], index: 2, kind: input, shape index: {}]
  %s3 = inlined_call_operand.hbm [shape: bf16[256,256], index: 3, kind: input, shape index: {}]
  %s4 = inlined_call_operand.vmem [shape: f32[1,256], index: 4, kind: input, shape index: {}]
  %s5 = inlined_call_operand.vmem [shape: bf16[256,64], index: 5, kind: input, shape index: {}]
  %s6 = inlined_call_operand.vmem [shape: f32[1,64], index: 6, kind: input, shape index: {}]
  %s7 = inlined_call_operand.vmem [shape: bf16[64,12], index: 7, kind: input, shape index: {}]
  %s8 = inlined_call_operand.vmem [shape: f32[1,12], index: 8, kind: input, shape index: {}]
  %s9 = inlined_call_operand.hbm [shape: bf16[16,12], index: 9, kind: output, shape index: {}]
  %s10 = sld [smem:[#allocation0]]
  $region50: #{tpu_custom_call.1} parent=0
    _
  %s12 = ssub.s32 1, %s10
  %s13 = scalar_select 0, %s12, %s10
  $region1: #{tpu_custom_call.1} parent=0
    #allocation2 [shape = 'u8[131072]{0}', space=vmem, size = 0x20000, scoped, tag = 'input window, operand 3, single buffered']
    #allocation3 [shape = 's32[1]{0}', space=sflag, size = 0x4, scoped, tag = 'scoped memory for tpu_custom_call.1']
    #allocation4 [shape = 's32[1]{0}', space=sflag, size = 0x4, scoped, tag = 'scoped memory for tpu_custom_call.1']
    #allocation5 [shape = 'u8[4096]{0}', space=vmem, size = 0x1000, scoped, tag = 'output window, operand 0, single buffered']
    %14 = vsyncpa [#allocation3], 0
    %15 = vsyncpa [#allocation4], 0
    // Predicated region
    $region2: #{tpu_custom_call.1} parent=1 // pred_check
      _
    $region3: #{tpu_custom_call.1} parent=1 // pred_check_branch
      %17 = sbr.rel (0) target = $region5
    $region4: #{tpu_custom_call.1} parent=1 // pred_region
      _
    $region5: #{tpu_custom_call.1} parent=1 // pred_fallthru
      _
    // Predicated region
    $region6: #{tpu_custom_call.1} parent=1 // pred_check
      _
    $region7: #{tpu_custom_call.1} parent=1 // pred_check_branch
      %19 = sbr.rel (0) target = $region9
    $region8: #{tpu_custom_call.1} parent=1 // pred_region
      _
    $region9: #{tpu_custom_call.1} parent=1 // pred_fallthru
      _
    // Predicated region
    $region10: #{tpu_custom_call.1} parent=1 // pred_check
      _
    $region11: #{tpu_custom_call.1} parent=1 // pred_check_branch
      %21 = sbr.rel (0) target = $region13
    $region12: #{tpu_custom_call.1} parent=1 // pred_region
      _
    $region13: #{tpu_custom_call.1} parent=1 // pred_fallthru
      _
    // Predicated region
    $region14: #{tpu_custom_call.1} parent=1 // pred_check
      _
    $region15: #{tpu_custom_call.1} parent=1 // pred_check_branch
      %23 = sbr.rel (0) target = $region17
    $region16: #{tpu_custom_call.1} parent=1 // pred_region
      %s25 = ssub.s32 4096, 4096
      %26 = vsyncadd [#allocation3], %s25
      %s27 = sshll.u32 [#allocation2], 4
      %s28 = int_to_ptr.vmem [resolvable:$true] %s27
      %33 = dma.hbm_to_vmem [thread:$0]  %s3, 4096, %s28, [#allocation3], 128, 128, 8
    $region17: #{tpu_custom_call.1} parent=1 // pred_fallthru
      _
    // Predicated region
    $region18: #{tpu_custom_call.1} parent=1 // pred_check
      _
    $region19: #{tpu_custom_call.1} parent=1 // pred_check_branch
      %35 = sbr.rel (0) target = $region21
    $region20: #{tpu_custom_call.1} parent=1 // pred_region
      _
    $region21: #{tpu_custom_call.1} parent=1 // pred_fallthru
      _
    // Predicated region
    $region22: #{tpu_custom_call.1} parent=1 // pred_check
      _
    $region23: #{tpu_custom_call.1} parent=1 // pred_check_branch
      %37 = sbr.rel (0) target = $region25
    $region24: #{tpu_custom_call.1} parent=1 // pred_region
      _
    $region25: #{tpu_custom_call.1} parent=1 // pred_fallthru
      _
    // Predicated region
    $region26: #{tpu_custom_call.1} parent=1 // pred_check
      _
    $region27: #{tpu_custom_call.1} parent=1 // pred_check_branch
      %39 = sbr.rel (0) target = $region29
    $region28: #{tpu_custom_call.1} parent=1 // pred_region
      _
    $region29: #{tpu_custom_call.1} parent=1 // pred_fallthru
      _
    // Predicated region
    $region30: #{tpu_custom_call.1} parent=1 // pred_check
      _
    $region31: #{tpu_custom_call.1} parent=1 // pred_check_branch
      %41 = sbr.rel (0) target = $region33
    $region32: #{tpu_custom_call.1} parent=1 // pred_region
      _
    $region33: #{tpu_custom_call.1} parent=1 // pred_fallthru
      _
    // Predicated region
    $region34: #{tpu_custom_call.1} parent=1 // pred_check
      _
    $region35: #{tpu_custom_call.1} parent=1 // pred_check_branch
      %43 = sbr.rel (0) target = $region37
    $region36: #{tpu_custom_call.1} parent=1 // pred_region
      _
    $region37: #{tpu_custom_call.1} parent=1 // pred_fallthru
      _
    // Predicated region
    $region38: #{tpu_custom_call.1} parent=1 // pred_check
      _
    $region39: #{tpu_custom_call.1} parent=1 // pred_check_branch
      %45 = sbr.rel (0) target = $region41
    $region40: #{tpu_custom_call.1} parent=1 // pred_region
      %46 = dma.done [#allocation3], 4096
    $region41: #{tpu_custom_call.1} parent=1 // pred_fallthru
      _
    %v48 = vld [vmem:[%s0] sm:$0xf]
    %v49 = vld [vmem:[%s0 + $0x4] sm:$0xf]
    %v50 = vld [vmem:[%s1] sm:$0xff]
    %v51 = vld [vmem:[%s1 + $0x8] sm:$0xff]
    %v52 = vld [vmem:[%s2] sm:$0x3]
    %v54 = vlaneseq
    %v55 = vshrl.u32 %v54, 7
    %v56 = vsub.s32 0, %v55
    %v57 = vrot.slane %v52, %v56
    %v58 = vlaneseq
    %v59 = vshrl.u32 %v58, 7
    %v60 = vsub.s32 1, %v59
    %v61 = vrot.slane %v52, %v60
    %v66 = vunpack.c.l.b16 %v48
    %v67 = vunpack.c.l.b16 %v49
    %v68 = vpack.c.b16 %v67, %v66
    %v71 = vunpack.c.l.b16 %v50
    %v72 = vunpack.c.h.b16 %v50
    %v73 = vunpack.c.l.b16 %v51
    %v74 = vunpack.c.h.b16 %v51
    %v75 = vpack.c.b16 %v73, %v71
    %v76 = vpack.c.b16 %v74, %v72
    %vm79 = vcmask 130048
    %v81 = vsel %vm79, %v68, 0
    %83 = vmatprep.subr.bf16.mxu0 %v76
    %84 = vmatpush1.bf16.msra.mxu0 %v75
    %85 = vmatprep.subr.bf16.mxu0 0
    %86 = vmatpush1.bf16.msra.mxu0 0
    %87 = vmatprep.subr.bf16.mxu0 0
    %88 = vmatpush1.bf16.msra.mxu0 0
    %89 = vmatprep.subr.bf16.mxu0 0
    %90 = vmatpush1.bf16.msra.mxu0 0
    %91 = vmatprep.subr.bf16.mxu0 0
    %92 = vmatpush1.bf16.msra.mxu0 0
    %93 = vmatprep.subr.bf16.mxu0 0
    %94 = vmatpush1.bf16.msra.mxu0 0
    %95 = vmatprep.subr.bf16.mxu0 0
    %96 = vmatpush1.bf16.msra.mxu0 0
    %97 = vmatprep.subr.bf16.mxu0 0
    %98 = vmatpush1.bf16.msra.mxu0 0
    %99 = vmatprep.subr.bf16.mxu0 0
    %100 = vmatpush1.bf16.msra.mxu0 0
    %101 = vmatprep.subr.bf16.mxu0 0
    %102 = vmatpush1.bf16.msra.mxu0 0
    %103 = vmatprep.subr.bf16.mxu0 0
    %104 = vmatpush1.bf16.msra.mxu0 0
    %105 = vmatprep.subr.bf16.mxu0 0
    %106 = vmatpush1.bf16.msra.mxu0 0
    %107 = vmatprep.subr.bf16.mxu0 0
    %108 = vmatpush1.bf16.msra.mxu0 0
    %109 = vmatprep.subr.bf16.mxu0 0
    %110 = vmatpush1.bf16.msra.mxu0 0
    %111 = vmatprep.subr.bf16.mxu0 0
    %112 = vmatpush1.bf16.msra.mxu0 0
    %113 = vmatprep.subr.bf16.mxu0 0
    %114 = vmatpush1.bf16.msra.mxu0 0
    %115 = vmatprep.mubr.bf16.mxu0 0
    %116 = vmatmul.mubr.bf16.gmra.mrb[0].mxu0 %v81
    %v117 = vpop.f32.mrb[0].mxu0
    %v118 = vadd.f32 %v57, %v117
    %v119 = vpop.f32.mrb[0].mxu0
    %v120 = vadd.f32 %v61, %v119
    %v121 = vpop.f32.mrb[0].mxu0
    %v122 = vadd.f32 %v57, %v121
    %v123 = vpop.f32.mrb[0].mxu0
    %v124 = vadd.f32 %v61, %v123
    %125 = vdwg.mxu0
    %v126 = vmax.f32 %v118, 0.0
    %v127 = vmax.f32 %v120, 0.0
    %v128 = vmax.f32 %v122, 0.0
    %v129 = vmax.f32 %v124, 0.0
    %v130 = vpack.c.bf16 %v128, %v126
    %v131 = vpack.c.bf16 %v129, %v127
    %v132 = vld [vmem:[#allocation2] sm:$0xff]
    %v133 = vld [vmem:[#allocation2 + $0x8] sm:$0xff]
    %v134 = vld [vmem:[#allocation2 + $0x10] sm:$0xff]
    %v135 = vld [vmem:[#allocation2 + $0x18] sm:$0xff]
    %v136 = vld [vmem:[#allocation2 + $0x20] sm:$0xff]
    %v137 = vld [vmem:[#allocation2 + $0x28] sm:$0xff]
    %v138 = vld [vmem:[#allocation2 + $0x30] sm:$0xff]
    %v139 = vld [vmem:[#allocation2 + $0x38] sm:$0xff]
    %v140 = vld [vmem:[#allocation2 + $0x40] sm:$0xff]
    %v141 = vld [vmem:[#allocation2 + $0x48] sm:$0xff]
    %v142 = vld [vmem:[#allocation2 + $0x50] sm:$0xff]
    %v143 = vld [vmem:[#allocation2 + $0x58] sm:$0xff]
    %v144 = vld [vmem:[#allocation2 + $0x60] sm:$0xff]
    %v145 = vld [vmem:[#allocation2 + $0x68] sm:$0xff]
    %v146 = vld [vmem:[#allocation2 + $0x70] sm:$0xff]
    %v147 = vld [vmem:[#allocation2 + $0x78] sm:$0xff]
    %v148 = vld [vmem:[#allocation2 + $0x80] sm:$0xff]
    %v149 = vld [vmem:[#allocation2 + $0x88] sm:$0xff]
    %v150 = vld [vmem:[#allocation2 + $0x90] sm:$0xff]
    %v151 = vld [vmem:[#allocation2 + $0x98] sm:$0xff]
    %v152 = vld [vmem:[#allocation2 + $0xa0] sm:$0xff]
    %v153 = vld [vmem:[#allocation2 + $0xa8] sm:$0xff]
    %v154 = vld [vmem:[#allocation2 + $0xb0] sm:$0xff]
    %v155 = vld [vmem:[#allocation2 + $0xb8] sm:$0xff]
    %v156 = vld [vmem:[#allocation2 + $0xc0] sm:$0xff]
    %v157 = vld [vmem:[#allocation2 + $0xc8] sm:$0xff]
    %v158 = vld [vmem:[#allocation2 + $0xd0] sm:$0xff]
    %v159 = vld [vmem:[#allocation2 + $0xd8] sm:$0xff]
    %v160 = vld [vmem:[#allocation2 + $0xe0] sm:$0xff]
    %v161 = vld [vmem:[#allocation2 + $0xe8] sm:$0xff]
    %v162 = vld [vmem:[#allocation2 + $0xf0] sm:$0xff]
    %v163 = vld [vmem:[#allocation2 + $0xf8] sm:$0xff]
    %v164 = vld [vmem:[%s4] sm:$0x3]
    %v166 = vlaneseq
    %v167 = vshrl.u32 %v166, 7
    %v168 = vsub.s32 0, %v167
    %v169 = vrot.slane %v164, %v168
    %v170 = vlaneseq
    %v171 = vshrl.u32 %v170, 7
    %v172 = vsub.s32 1, %v171
    %v173 = vrot.slane %v164, %v172
    %v208 = vunpack.c.l.b16 %v132
    %v209 = vunpack.c.h.b16 %v132
    %v210 = vunpack.c.l.b16 %v133
    %v211 = vunpack.c.h.b16 %v133
    %v212 = vunpack.c.l.b16 %v134
    %v213 = vunpack.c.h.b16 %v134
    %v214 = vunpack.c.l.b16 %v135
    %v215 = vunpack.c.h.b16 %v135
    %v216 = vunpack.c.l.b16 %v136
    %v217 = vunpack.c.h.b16 %v136
    %v218 = vunpack.c.l.b16 %v137
    %v219 = vunpack.c.h.b16 %v137
    %v220 = vunpack.c.l.b16 %v138
    %v221 = vunpack.c.h.b16 %v138
    %v222 = vunpack.c.l.b16 %v139
    %v223 = vunpack.c.h.b16 %v139
    %v224 = vunpack.c.l.b16 %v140
    %v225 = vunpack.c.h.b16 %v140
    %v226 = vunpack.c.l.b16 %v141
    %v227 = vunpack.c.h.b16 %v141
    %v228 = vunpack.c.l.b16 %v142
    %v229 = vunpack.c.h.b16 %v142
    %v230 = vunpack.c.l.b16 %v143
    %v231 = vunpack.c.h.b16 %v143
    %v232 = vunpack.c.l.b16 %v144
    %v233 = vunpack.c.h.b16 %v144
    %v234 = vunpack.c.l.b16 %v145
    %v235 = vunpack.c.h.b16 %v145
    %v236 = vunpack.c.l.b16 %v146
    %v237 = vunpack.c.h.b16 %v146
    %v238 = vunpack.c.l.b16 %v147
    %v239 = vunpack.c.h.b16 %v147
    %v240 = vunpack.c.l.b16 %v148
    %v241 = vunpack.c.h.b16 %v148
    %v242 = vunpack.c.l.b16 %v149
    %v243 = vunpack.c.h.b16 %v149
    %v244 = vunpack.c.l.b16 %v150
    %v245 = vunpack.c.h.b16 %v150
    %v246 = vunpack.c.l.b16 %v151
    %v247 = vunpack.c.h.b16 %v151
    %v248 = vunpack.c.l.b16 %v152
    %v249 = vunpack.c.h.b16 %v152
    %v250 = vunpack.c.l.b16 %v153
    %v251 = vunpack.c.h.b16 %v153
    %v252 = vunpack.c.l.b16 %v154
    %v253 = vunpack.c.h.b16 %v154
    %v254 = vunpack.c.l.b16 %v155
    %v255 = vunpack.c.h.b16 %v155
    %v256 = vunpack.c.l.b16 %v156
    %v257 = vunpack.c.h.b16 %v156
    %v258 = vunpack.c.l.b16 %v157
    %v259 = vunpack.c.h.b16 %v157
    %v260 = vunpack.c.l.b16 %v158
    %v261 = vunpack.c.h.b16 %v158
    %v262 = vunpack.c.l.b16 %v159
    %v263 = vunpack.c.h.b16 %v159
    %v264 = vunpack.c.l.b16 %v160
    %v265 = vunpack.c.h.b16 %v160
    %v266 = vunpack.c.l.b16 %v161
    %v267 = vunpack.c.h.b16 %v161
    %v268 = vunpack.c.l.b16 %v162
    %v269 = vunpack.c.h.b16 %v162
    %v270 = vunpack.c.l.b16 %v163
    %v271 = vunpack.c.h.b16 %v163
    %v272 = vpack.c.b16 %v210, %v208
    %v273 = vpack.c.b16 %v211, %v209
    %v274 = vpack.c.b16 %v214, %v212
    %v275 = vpack.c.b16 %v215, %v213
    %v276 = vpack.c.b16 %v218, %v216
    %v277 = vpack.c.b16 %v219, %v217
    %v278 = vpack.c.b16 %v222, %v220
    %v279 = vpack.c.b16 %v223, %v221
    %v280 = vpack.c.b16 %v226, %v224
    %v281 = vpack.c.b16 %v227, %v225
    %v282 = vpack.c.b16 %v230, %v228
    %v283 = vpack.c.b16 %v231, %v229
    %v284 = vpack.c.b16 %v234, %v232
    %v285 = vpack.c.b16 %v235, %v233
    %v286 = vpack.c.b16 %v238, %v236
    %v287 = vpack.c.b16 %v239, %v237
    %v288 = vpack.c.b16 %v242, %v240
    %v289 = vpack.c.b16 %v243, %v241
    %v290 = vpack.c.b16 %v246, %v244
    %v291 = vpack.c.b16 %v247, %v245
    %v292 = vpack.c.b16 %v250, %v248
    %v293 = vpack.c.b16 %v251, %v249
    %v294 = vpack.c.b16 %v254, %v252
    %v295 = vpack.c.b16 %v255, %v253
    %v296 = vpack.c.b16 %v258, %v256
    %v297 = vpack.c.b16 %v259, %v257
    %v298 = vpack.c.b16 %v262, %v260
    %v299 = vpack.c.b16 %v263, %v261
    %v300 = vpack.c.b16 %v266, %v264
    %v301 = vpack.c.b16 %v267, %v265
    %v302 = vpack.c.b16 %v270, %v268
    %v303 = vpack.c.b16 %v271, %v269
    %336 = vmatprep.subr.bf16.mxu0 %v273
    %337 = vmatpush1.bf16.msra.mxu0 %v272
    %338 = vmatprep.subr.bf16.mxu0 %v275
    %339 = vmatpush1.bf16.msra.mxu0 %v274
    %340 = vmatprep.subr.bf16.mxu0 %v277
    %341 = vmatpush1.bf16.msra.mxu0 %v276
    %342 = vmatprep.subr.bf16.mxu0 %v279
    %343 = vmatpush1.bf16.msra.mxu0 %v278
    %344 = vmatprep.subr.bf16.mxu0 %v281
    %345 = vmatpush1.bf16.msra.mxu0 %v280
    %346 = vmatprep.subr.bf16.mxu0 %v283
    %347 = vmatpush1.bf16.msra.mxu0 %v282
    %348 = vmatprep.subr.bf16.mxu0 %v285
    %349 = vmatpush1.bf16.msra.mxu0 %v284
    %350 = vmatprep.subr.bf16.mxu0 %v287
    %351 = vmatpush1.bf16.msra.mxu0 %v286
    %352 = vmatprep.subr.bf16.mxu0 %v289
    %353 = vmatpush1.bf16.msra.mxu0 %v288
    %354 = vmatprep.subr.bf16.mxu0 %v291
    %355 = vmatpush1.bf16.msra.mxu0 %v290
    %356 = vmatprep.subr.bf16.mxu0 %v293
    %357 = vmatpush1.bf16.msra.mxu0 %v292
    %358 = vmatprep.subr.bf16.mxu0 %v295
    %359 = vmatpush1.bf16.msra.mxu0 %v294
    %360 = vmatprep.subr.bf16.mxu0 %v297
    %361 = vmatpush1.bf16.msra.mxu0 %v296
    %362 = vmatprep.subr.bf16.mxu0 %v299
    %363 = vmatpush1.bf16.msra.mxu0 %v298
    %364 = vmatprep.subr.bf16.mxu0 %v301
    %365 = vmatpush1.bf16.msra.mxu0 %v300
    %366 = vmatprep.subr.bf16.mxu0 %v303
    %367 = vmatpush1.bf16.msra.mxu0 %v302
    %368 = vmatprep.mubr.bf16.mxu0 %v131
    %369 = vmatmul.mubr.bf16.gmra.mrb[0].mxu0 %v130
    %v370 = vpop.f32.mrb[0].mxu0
    %v371 = vadd.f32 %v169, %v370
    %v372 = vpop.f32.mrb[0].mxu0
    %v373 = vadd.f32 %v173, %v372
    %v374 = vpop.f32.mrb[0].mxu0
    %v375 = vadd.f32 %v169, %v374
    %v376 = vpop.f32.mrb[0].mxu0
    %v377 = vadd.f32 %v173, %v376
    %378 = vdwg.mxu0
    %v379 = vmax.f32 %v371, 0.0
    %v380 = vmax.f32 %v373, 0.0
    %v381 = vmax.f32 %v375, 0.0
    %v382 = vmax.f32 %v377, 0.0
    %v383 = vpack.c.bf16 %v381, %v379
    %v384 = vpack.c.bf16 %v382, %v380
    %v385 = vld [vmem:[%s5] sm:$0xf]
    %v386 = vld [vmem:[%s5 + $0x4] sm:$0xf]
    %v387 = vld [vmem:[%s5 + $0x8] sm:$0xf]
    %v388 = vld [vmem:[%s5 + $0xc] sm:$0xf]
    %v389 = vld [vmem:[%s5 + $0x10] sm:$0xf]
    %v390 = vld [vmem:[%s5 + $0x14] sm:$0xf]
    %v391 = vld [vmem:[%s5 + $0x18] sm:$0xf]
    %v392 = vld [vmem:[%s5 + $0x1c] sm:$0xf]
    %v393 = vld [vmem:[%s5 + $0x20] sm:$0xf]
    %v394 = vld [vmem:[%s5 + $0x24] sm:$0xf]
    %v395 = vld [vmem:[%s5 + $0x28] sm:$0xf]
    %v396 = vld [vmem:[%s5 + $0x2c] sm:$0xf]
    %v397 = vld [vmem:[%s5 + $0x30] sm:$0xf]
    %v398 = vld [vmem:[%s5 + $0x34] sm:$0xf]
    %v399 = vld [vmem:[%s5 + $0x38] sm:$0xf]
    %v400 = vld [vmem:[%s5 + $0x3c] sm:$0xf]
    %v401 = vld [vmem:[%s5 + $0x40] sm:$0xf]
    %v402 = vld [vmem:[%s5 + $0x44] sm:$0xf]
    %v403 = vld [vmem:[%s5 + $0x48] sm:$0xf]
    %v404 = vld [vmem:[%s5 + $0x4c] sm:$0xf]
    %v405 = vld [vmem:[%s5 + $0x50] sm:$0xf]
    %v406 = vld [vmem:[%s5 + $0x54] sm:$0xf]
    %v407 = vld [vmem:[%s5 + $0x58] sm:$0xf]
    %v408 = vld [vmem:[%s5 + $0x5c] sm:$0xf]
    %v409 = vld [vmem:[%s5 + $0x60] sm:$0xf]
    %v410 = vld [vmem:[%s5 + $0x64] sm:$0xf]
    %v411 = vld [vmem:[%s5 + $0x68] sm:$0xf]
    %v412 = vld [vmem:[%s5 + $0x6c] sm:$0xf]
    %v413 = vld [vmem:[%s5 + $0x70] sm:$0xf]
    %v414 = vld [vmem:[%s5 + $0x74] sm:$0xf]
    %v415 = vld [vmem:[%s5 + $0x78] sm:$0xf]
    %v416 = vld [vmem:[%s5 + $0x7c] sm:$0xf]
    %v417 = vld [vmem:[%s6] sm:$0x1]
    %v419 = vlaneseq
    %v420 = vshrl.u32 %v419, 7
    %v421 = vsub.s32 0, %v420
    %v422 = vrot.slane %v417, %v421
    %v456 = vunpack.c.l.b16 %v385
    %v457 = vunpack.c.l.b16 %v386
    %v458 = vunpack.c.l.b16 %v387
    %v459 = vunpack.c.l.b16 %v388
    %v460 = vunpack.c.l.b16 %v389
    %v461 = vunpack.c.l.b16 %v390
    %v462 = vunpack.c.l.b16 %v391
    %v463 = vunpack.c.l.b16 %v392
    %v464 = vunpack.c.l.b16 %v393
    %v465 = vunpack.c.l.b16 %v394
    %v466 = vunpack.c.l.b16 %v395
    %v467 = vunpack.c.l.b16 %v396
    %v468 = vunpack.c.l.b16 %v397
    %v469 = vunpack.c.l.b16 %v398
    %v470 = vunpack.c.l.b16 %v399
    %v471 = vunpack.c.l.b16 %v400
    %v472 = vunpack.c.l.b16 %v401
    %v473 = vunpack.c.l.b16 %v402
    %v474 = vunpack.c.l.b16 %v403
    %v475 = vunpack.c.l.b16 %v404
    %v476 = vunpack.c.l.b16 %v405
    %v477 = vunpack.c.l.b16 %v406
    %v478 = vunpack.c.l.b16 %v407
    %v479 = vunpack.c.l.b16 %v408
    %v480 = vunpack.c.l.b16 %v409
    %v481 = vunpack.c.l.b16 %v410
    %v482 = vunpack.c.l.b16 %v411
    %v483 = vunpack.c.l.b16 %v412
    %v484 = vunpack.c.l.b16 %v413
    %v485 = vunpack.c.l.b16 %v414
    %v486 = vunpack.c.l.b16 %v415
    %v487 = vunpack.c.l.b16 %v416
    %v488 = vpack.c.b16 %v457, %v456
    %v489 = vpack.c.b16 %v459, %v458
    %v490 = vpack.c.b16 %v461, %v460
    %v491 = vpack.c.b16 %v463, %v462
    %v492 = vpack.c.b16 %v465, %v464
    %v493 = vpack.c.b16 %v467, %v466
    %v494 = vpack.c.b16 %v469, %v468
    %v495 = vpack.c.b16 %v471, %v470
    %v496 = vpack.c.b16 %v473, %v472
    %v497 = vpack.c.b16 %v475, %v474
    %v498 = vpack.c.b16 %v477, %v476
    %v499 = vpack.c.b16 %v479, %v478
    %v500 = vpack.c.b16 %v481, %v480
    %v501 = vpack.c.b16 %v483, %v482
    %v502 = vpack.c.b16 %v485, %v484
    %v503 = vpack.c.b16 %v487, %v486
    %520 = vmatprep.subr.bf16.mxu0 0
    %521 = vmatpush1.bf16.msra.mxu0 %v488
    %522 = vmatprep.subr.bf16.mxu0 0
    %523 = vmatpush1.bf16.msra.mxu0 %v489
    %524 = vmatprep.subr.bf16.mxu0 0
    %525 = vmatpush1.bf16.msra.mxu0 %v490
    %526 = vmatprep.subr.bf16.mxu0 0
    %527 = vmatpush1.bf16.msra.mxu0 %v491
    %528 = vmatprep.subr.bf16.mxu0 0
    %529 = vmatpush1.bf16.msra.mxu0 %v492
    %530 = vmatprep.subr.bf16.mxu0 0
    %531 = vmatpush1.bf16.msra.mxu0 %v493
    %532 = vmatprep.subr.bf16.mxu0 0
    %533 = vmatpush1.bf16.msra.mxu0 %v494
    %534 = vmatprep.subr.bf16.mxu0 0
    %535 = vmatpush1.bf16.msra.mxu0 %v495
    %536 = vmatprep.subr.bf16.mxu0 0
    %537 = vmatpush1.bf16.msra.mxu0 %v496
    %538 = vmatprep.subr.bf16.mxu0 0
    %539 = vmatpush1.bf16.msra.mxu0 %v497
    %540 = vmatprep.subr.bf16.mxu0 0
    %541 = vmatpush1.bf16.msra.mxu0 %v498
    %542 = vmatprep.subr.bf16.mxu0 0
    %543 = vmatpush1.bf16.msra.mxu0 %v499
    %544 = vmatprep.subr.bf16.mxu0 0
    %545 = vmatpush1.bf16.msra.mxu0 %v500
    %546 = vmatprep.subr.bf16.mxu0 0
    %547 = vmatpush1.bf16.msra.mxu0 %v501
    %548 = vmatprep.subr.bf16.mxu0 0
    %549 = vmatpush1.bf16.msra.mxu0 %v502
    %550 = vmatprep.subr.bf16.mxu0 0
    %551 = vmatpush1.bf16.msra.mxu0 %v503
    %552 = vmatprep.mubr.bf16.mxu0 %v384
    %553 = vmatmul.mubr.bf16.gmra.mrb[0].mxu0 %v383
    %v554 = vpop.f32.mrb[0].mxu0
    %v555 = vadd.f32 %v422, %v554
    %v556 = vpop.f32.mrb[0].mxu0
    %v557 = vpop.f32.mrb[0].mxu0
    %v558 = vadd.f32 %v422, %v557
    %v559 = vpop.f32.mrb[0].mxu0
    %560 = vdwg.mxu0
    %v561 = vmax.f32 %v555, 0.0
    %v562 = vmax.f32 %v558, 0.0
    %v563 = vpack.c.bf16 %v562, %v561
    %v564 = vld [vmem:[%s7] sm:$0xf]
    %v565 = vld [vmem:[%s7 + $0x4] sm:$0xf]
    %v566 = vld [vmem:[%s7 + $0x8] sm:$0xf]
    %v567 = vld [vmem:[%s7 + $0xc] sm:$0xf]
    %v568 = vld [vmem:[%s7 + $0x10] sm:$0xf]
    %v569 = vld [vmem:[%s7 + $0x14] sm:$0xf]
    %v570 = vld [vmem:[%s7 + $0x18] sm:$0xf]
    %v571 = vld [vmem:[%s7 + $0x1c] sm:$0xf]
    %v572 = vld [vmem:[%s8] sm:$0x1]
    %v574 = vlaneseq
    %v575 = vshrl.u32 %v574, 7
    %v576 = vsub.s32 0, %v575
    %v577 = vrot.slane %v572, %v576
    %v587 = vunpack.c.l.b16 %v564
    %v588 = vunpack.c.l.b16 %v565
    %v589 = vunpack.c.l.b16 %v566
    %v590 = vunpack.c.l.b16 %v567
    %v591 = vunpack.c.l.b16 %v568
    %v592 = vunpack.c.l.b16 %v569
    %v593 = vunpack.c.l.b16 %v570
    %v594 = vunpack.c.l.b16 %v571
    %v595 = vpack.c.b16 %v588, %v587
    %v596 = vpack.c.b16 %v590, %v589
    %v597 = vpack.c.b16 %v592, %v591
    %v598 = vpack.c.b16 %v594, %v593
    %vm603 = vcmask 523264
    %v605 = vsel %vm603, %v563, 0
    %607 = vmatprep.subr.bf16.mxu0 0
    %608 = vmatpush1.bf16.msra.mxu0 %v595
    %609 = vmatprep.subr.bf16.mxu0 0
    %610 = vmatpush1.bf16.msra.mxu0 %v596
    %611 = vmatprep.subr.bf16.mxu0 0
    %612 = vmatpush1.bf16.msra.mxu0 %v597
    %613 = vmatprep.subr.bf16.mxu0 0
    %614 = vmatpush1.bf16.msra.mxu0 %v598
    %615 = vmatprep.subr.bf16.mxu0 0
    %616 = vmatpush1.bf16.msra.mxu0 0
    %617 = vmatprep.subr.bf16.mxu0 0
    %618 = vmatpush1.bf16.msra.mxu0 0
    %619 = vmatprep.subr.bf16.mxu0 0
    %620 = vmatpush1.bf16.msra.mxu0 0
    %621 = vmatprep.subr.bf16.mxu0 0
    %622 = vmatpush1.bf16.msra.mxu0 0
    %623 = vmatprep.subr.bf16.mxu0 0
    %624 = vmatpush1.bf16.msra.mxu0 0
    %625 = vmatprep.subr.bf16.mxu0 0
    %626 = vmatpush1.bf16.msra.mxu0 0
    %627 = vmatprep.subr.bf16.mxu0 0
    %628 = vmatpush1.bf16.msra.mxu0 0
    %629 = vmatprep.subr.bf16.mxu0 0
    %630 = vmatpush1.bf16.msra.mxu0 0
    %631 = vmatprep.subr.bf16.mxu0 0
    %632 = vmatpush1.bf16.msra.mxu0 0
    %633 = vmatprep.subr.bf16.mxu0 0
    %634 = vmatpush1.bf16.msra.mxu0 0
    %635 = vmatprep.subr.bf16.mxu0 0
    %636 = vmatpush1.bf16.msra.mxu0 0
    %637 = vmatprep.subr.bf16.mxu0 0
    %638 = vmatpush1.bf16.msra.mxu0 0
    %639 = vmatprep.mubr.bf16.mxu0 0
    %640 = vmatmul.mubr.bf16.gmra.mrb[0].mxu0 %v605
    %v641 = vpop.f32.mrb[0].mxu0
    %v642 = vadd.f32 %v577, %v641
    %v643 = vpop.f32.mrb[0].mxu0
    %v644 = vpop.f32.mrb[0].mxu0
    %v645 = vadd.f32 %v577, %v644
    %v646 = vpop.f32.mrb[0].mxu0
    %647 = vdwg.mxu0
    %v648 = vpack.c.bf16 %v645, %v642
    %v650 = vunpack.c.l.b16 %v648
    %v651 = vunpack.c.h.b16 %v648
    %v652 = vpack.c.b16 %v650, %v650
    %v653 = vpack.c.b16 %v651, %v651
    %vm656 = vcmask 93184
    %657 = vst.msk [vmem:[#allocation5] sm:$0xf] %vm656, %v652
    %658 = vst.msk [vmem:[#allocation5 + $0x4] sm:$0xf] %vm656, %v653
    // Predicated region
    $region42: #{tpu_custom_call.1} parent=1 // pred_check
      _
    $region43: #{tpu_custom_call.1} parent=1 // pred_check_branch
      %660 = sbr.rel (0) target = $region45
    $region44: #{tpu_custom_call.1} parent=1 // pred_region
      %s662 = ssub.s32 128, 128
      %663 = vsyncadd [#allocation4], %s662
      %s664 = sshll.u32 [#allocation5], 4
      %s665 = int_to_ptr.vmem [resolvable:$true] %s664
      %670 = dma.vmem_to_hbm [thread:$0]  %s665, 128, %s9, [#allocation4], 64, 64, 4
    $region45: #{tpu_custom_call.1} parent=1 // pred_fallthru
      _
    // Predicated region
    $region46: #{tpu_custom_call.1} parent=1 // pred_check
      _
    $region47: #{tpu_custom_call.1} parent=1 // pred_check_branch
      %672 = sbr.rel (0) target = $region49
    $region48: #{tpu_custom_call.1} parent=1 // pred_region
      %673 = dma.done [#allocation4], 128
    $region49: #{tpu_custom_call.1} parent=1 // pred_fallthru
      _
    %674 = vsyncpa [#allocation3], 1
    %675 = vsyncpa [#allocation4], 1

</llo_original>
